<compile_context>
chip_gen: v7x
topology: tpu7x:2x2x1
jax: 0.10.0
libtpu: 0.0.40
codegen_flags: <defaults>
</compile_context>

<pallas_src>
import functools

import jax
import jax.numpy as jnp
from jax.experimental import pallas as pl
from jax.experimental.pallas import tpu as pltpu

F_FEATURES = 11
HIDDEN = (256, 256)
LN_EPS = 1e-5


def _round_up(x, m):
    return ((x + m - 1) // m) * m


def _default_bf16_epilogue():
    """bf16 VPU/EUP exist on v6e (Trillium) and later; v2-v5 lack them."""
    try:
        kind = jax.devices()[0].device_kind.lower()
    except Exception:
        return False
    return not any(s in kind for s in ("v2", "v3", "v4", "v5"))


def _value_mlp_kernel(phi_ref, w1_ref, w2_ref, p_ref, out_ref, *, bf16_epilogue):
    """Fused MLP forward for one tile of rows.

    p_ref rows: 0=b1, 1=gamma1, 2=beta1, 3=b2, 4=gamma2, 5=beta2,
                6=w3 (head weight as a lane row), 7=[b3, 0, ...].
    """
    inv_h1 = jnp.float32(1.0 / HIDDEN[0])
    inv_h2 = jnp.float32(1.0 / HIDDEN[1])
    ep_dtype = jnp.bfloat16 if bf16_epilogue else jnp.float32

    p = p_ref[...]                                   # (8, 256) f32, VMEM-resident
    b1, g1, beta1 = p[0:1, :], p[1:2, :], p[2:3, :]
    b2, g2, beta2 = p[3:4, :], p[4:5, :], p[5:6, :]
    w3_row = p[6:7, :]
    b3 = p[7:8, 0:1]                                 # (1, 1)

    def ln_relu(h, g, beta, inv_h):
        # Reductions stay f32 (rsqrt goes to the EUP slot). Centered two-pass
        # variance: (h - mu) is reused for the normalize, so no extra pass.
        mu = jnp.sum(h, axis=-1, keepdims=True) * inv_h
        d = h - mu
        var = jnp.sum(d * d, axis=-1, keepdims=True) * inv_h
        inv_std = jax.lax.rsqrt(var + LN_EPS)
        # Scale/shift + ReLU epilogue in ep_dtype (bf16 on v6e/v7x halves the
        # VPU vreg ops and feeds matmul2/head directly; f32 on v5e).
        d_e = d.astype(ep_dtype)
        s_e = inv_std.astype(ep_dtype)
        return jnp.maximum(d_e * s_e * g.astype(ep_dtype) + beta.astype(ep_dtype), 0)

    # --- block 1: Linear(11 -> 256) + LayerNorm + ReLU ---------------------
    x = phi_ref[...].astype(jnp.bfloat16)            # bf16 MXU operand
    h = jnp.dot(x, w1_ref[...], preferred_element_type=jnp.float32) + b1
    h = ln_relu(h, g1, beta1, inv_h1)

    # --- block 2: Linear(256 -> 256) + LayerNorm + ReLU --------------------
    h = jnp.dot(h.astype(jnp.bfloat16), w2_ref[...],
                preferred_element_type=jnp.float32) + b2
    h = ln_relu(h, g2, beta2, inv_h2)

    # --- head: Linear(256 -> 1) as VPU multiply + lane reduce (no MXU) -----
    head = jnp.sum(h.astype(jnp.float32) * w3_row, axis=-1, keepdims=True) + b3
    out_ref[...] = head.astype(out_ref.dtype)


def value_mlp_forward(phi, params, *, tile_rows=2048, bf16_epilogue=None):
    """phi: [B, F_FEATURES] float32  ->  [B] float32 (matches PyTorch squeeze(-1)).

    Note: matmul operands are bf16 (MXU-native) with f32 accumulation; on
    v6e/v7x the LN/ReLU epilogue also runs in bf16. ~1e-2 relative deviation
    from a pure-f32 reference is the intended contract.
    """
    B, F = phi.shape
    assert F == F_FEATURES
    h1, h2 = HIDDEN
    (w1, b1, g1, beta1, w2, b2, g2, beta2, w3, b3) = params
    if bf16_epilogue is None:
        bf16_epilogue = _default_bf16_epilogue()

    # bf16 weights for the MXU; LN params / biases / head weight stay f32,
    # packed into a single (8, h) block (one DMA instead of eight).
    w1_bf = w1.astype(jnp.bfloat16)
    w2_bf = w2.astype(jnp.bfloat16)
    w3_row = w3.reshape(1, h2).astype(jnp.float32)
    b3_row = jnp.pad(b3.reshape(1, 1).astype(jnp.float32), ((0, 0), (0, h2 - 1)))
    packed = jnp.concatenate(
        [b1, g1, beta1, b2, g2, beta2, w3_row, b3_row], axis=0).astype(jnp.float32)

    # Tile sizing: multiple of 8 sublanes, no larger than the batch, and (when
    # B > 8) capped so there are >= 2 grid tiles for v7x's two TensorCores.
    tile_rows = max(8, _round_up(min(int(tile_rows), _round_up(B, 8)), 8))
    if B > 8:
        tile_rows = min(tile_rows, _round_up(pl.cdiv(B, 2), 8))
    n_tiles = pl.cdiv(B, tile_rows)

    # Explicit scoped-VMEM limit (v5e default is only 16 MiB; v7x physical is
    # 64 MiB, so clamp below that). Estimate: double-buffered lane-padded phi
    # and out tiles + f32 intermediates + resident weights/params.
    lane_bytes = 128 * 4
    vmem_est = (2 * tile_rows * lane_bytes          # phi tiles (double-buffered)
                + 2 * tile_rows * lane_bytes        # out tiles (double-buffered)
                + 6 * tile_rows * h1 * 4            # in-kernel f32 working set
                + (2 << 20))                        # weights + packed params + slack
    vmem_limit = int(min(max(vmem_est, 32 << 20), 56 << 20))

    kernel = functools.partial(_value_mlp_kernel, bf16_epilogue=bool(bf16_epilogue))

    out = pl.pallas_call(
        kernel,
        out_shape=jax.ShapeDtypeStruct((B, 1), jnp.float32),
        grid_spec=pltpu.PrefetchScalarGridSpec(
            num_scalar_prefetch=0,
            grid=(n_tiles,),
            in_specs=[
                pl.BlockSpec((tile_rows, F), lambda i: (i, 0)),   # phi tile
                pl.BlockSpec((F, h1), lambda i: (0, 0)),          # w1 (bf16), resident
                pl.BlockSpec((h1, h2), lambda i: (0, 0)),         # w2 (bf16), resident
                pl.BlockSpec((8, h1), lambda i: (0, 0)),          # packed small params
            ],
            out_specs=pl.BlockSpec((tile_rows, 1), lambda i: (i, 0)),
        ),
        compiler_params=pltpu.CompilerParams(
            dimension_semantics=("parallel",),
            vmem_limit_bytes=vmem_limit),
    )(phi, w1_bf, w2_bf, packed)

    return out[:, 0]  # squeeze(-1)


def _orthogonal(key, rows, cols):
    """Deterministic orthogonal init (mirrors nn.init.orthogonal_)."""
    n = max(rows, cols)
    a = jax.random.normal(key, (n, n), dtype=jnp.float32)
    q, r = jnp.linalg.qr(a)
    q = q * jnp.sign(jnp.diag(r))[None, :]
    return q[:rows, :cols]


def init_params(key):
    """Weights stored as [in_dim, out_dim]; biases zero; LN gamma=1, beta=0."""
    k1, k2, k3 = jax.random.split(key, 3)
    h1, h2 = HIDDEN
    w1 = _orthogonal(k1, F_FEATURES, h1)
    b1 = jnp.zeros((1, h1), jnp.float32)
    g1 = jnp.ones((1, h1), jnp.float32)
    beta1 = jnp.zeros((1, h1), jnp.float32)
    w2 = _orthogonal(k2, h1, h2)
    b2 = jnp.zeros((1, h2), jnp.float32)
    g2 = jnp.ones((1, h2), jnp.float32)
    beta2 = jnp.zeros((1, h2), jnp.float32)
    w3 = _orthogonal(k3, h2, 1)
    b3 = jnp.zeros((1, 1), jnp.float32)
    return (w1, b1, g1, beta1, w2, b2, g2, beta2, w3, b3)


def _reference(phi, params):
    """Pure-JAX f32 reference (PyTorch semantics)."""
    (w1, b1, g1, beta1, w2, b2, g2, beta2, w3, b3) = params

    def ln(h, g, be):
        mu = jnp.mean(h, axis=-1, keepdims=True)
        var = jnp.mean((h - mu) ** 2, axis=-1, keepdims=True)
        return (h - mu) / jnp.sqrt(var + LN_EPS) * g + be

    h = jnp.maximum(ln(phi @ w1 + b1, g1, beta1), 0.0)
    h = jnp.maximum(ln(h @ w2 + b2, g2, beta2), 0.0)
    return (h @ w3 + b3)[:, 0]


if __name__ == "__main__":
    key = jax.random.PRNGKey(0)
    kp, kx1, kx2 = jax.random.split(key, 3)
    params = init_params(kp)

    # Case 1: small batch, default (large) tile -> tile capped so grid has 2
    # parallel steps (v7x dual-TC path).
    B1 = 16
    phi1 = jax.random.normal(kx1, (B1, F_FEATURES), dtype=jnp.float32)
    out1 = jax.block_until_ready(value_mlp_forward(phi1, params))
    ref1 = _reference(phi1, params)
    assert out1.shape == (B1,)
    assert jnp.allclose(out1, ref1, atol=5e-2, rtol=5e-2), (out1, ref1)

    # Case 2: ragged batch with a small explicit tile -> multi-step grid with a
    # partial last block (no host-side padding copy).
    B2 = 19
    phi2 = jax.random.normal(kx2, (B2, F_FEATURES), dtype=jnp.float32)
    out2 = jax.block_until_ready(value_mlp_forward(phi2, params, tile_rows=8))
    ref2 = _reference(phi2, params)
    assert out2.shape == (B2,)
    assert jnp.allclose(out2, ref2, atol=5e-2, rtol=5e-2), (out2, ref2)

    # Case 3: force the f32 epilogue path (v5e behavior) for coverage.
    out3 = jax.block_until_ready(
        value_mlp_forward(phi2, params, tile_rows=8, bf16_epilogue=False))
    assert jnp.allclose(out3, ref2, atol=5e-2, rtol=5e-2), (out3, ref2)

    print("KERNEL_OK")
</pallas_src>

<mosaic_0001>
module attributes {stable_mosaic.version = 11 : i64} {
  func.func @_value_mlp_kernel(%arg0: i32, %arg1: memref<8x11xf32, #tpu.memory_space<vmem>>, %arg2: memref<11x256xbf16, #tpu.memory_space<vmem>>, %arg3: memref<256x256xbf16, #tpu.memory_space<vmem>>, %arg4: memref<8x256xf32, #tpu.memory_space<vmem>>, %arg5: memref<8x1xf32, #tpu.memory_space<vmem>>) attributes {dimension_semantics = [#tpu.dimension_semantics<parallel>], iteration_bounds = array<i64: 2>, scalar_prefetch = 0 : i64, scratch_operands = 0 : i64, tpu.core_type = #tpu.core_type<tc>, window_params = [{transform_indices = @transform_0, window_bounds = array<i64: 8, 11>}, {pipeline_mode = #tpu.pipeline_mode<synchronous>, transform_indices = @transform_1, window_bounds = array<i64: 11, 256>}, {pipeline_mode = #tpu.pipeline_mode<synchronous>, transform_indices = @transform_2, window_bounds = array<i64: 256, 256>}, {pipeline_mode = #tpu.pipeline_mode<synchronous>, transform_indices = @transform_3, window_bounds = array<i64: 8, 256>}, {transform_indices = @transform_4, window_bounds = array<i64: 8, 1>}]} {
    %c0 = arith.constant 0 : index
    %c0_0 = arith.constant 0 : index
    %0 = vector.load %arg4[%c0, %c0_0] : memref<8x256xf32, #tpu.memory_space<vmem>>, vector<8x256xf32>
    %1 = vector.extract_strided_slice %0 {offsets = [0, 0], sizes = [1, 256], strides = [1, 1]} : vector<8x256xf32> to vector<1x256xf32>
    %2 = vector.extract_strided_slice %0 {offsets = [1, 0], sizes = [1, 256], strides = [1, 1]} : vector<8x256xf32> to vector<1x256xf32>
    %3 = vector.extract_strided_slice %0 {offsets = [2, 0], sizes = [1, 256], strides = [1, 1]} : vector<8x256xf32> to vector<1x256xf32>
    %4 = vector.extract_strided_slice %0 {offsets = [3, 0], sizes = [1, 256], strides = [1, 1]} : vector<8x256xf32> to vector<1x256xf32>
    %5 = vector.extract_strided_slice %0 {offsets = [4, 0], sizes = [1, 256], strides = [1, 1]} : vector<8x256xf32> to vector<1x256xf32>
    %6 = vector.extract_strided_slice %0 {offsets = [5, 0], sizes = [1, 256], strides = [1, 1]} : vector<8x256xf32> to vector<1x256xf32>
    %7 = vector.extract_strided_slice %0 {offsets = [6, 0], sizes = [1, 256], strides = [1, 1]} : vector<8x256xf32> to vector<1x256xf32>
    %8 = vector.extract_strided_slice %0 {offsets = [7, 0], sizes = [1, 1], strides = [1, 1]} : vector<8x256xf32> to vector<1x1xf32>
    %c0_1 = arith.constant 0 : index
    %c0_2 = arith.constant 0 : index
    %9 = vector.load %arg1[%c0_1, %c0_2] : memref<8x11xf32, #tpu.memory_space<vmem>>, vector<8x11xf32>
    %10 = arith.truncf %9 : vector<8x11xf32> to vector<8x11xbf16>
    %c0_3 = arith.constant 0 : index
    %c0_4 = arith.constant 0 : index
    %11 = vector.load %arg2[%c0_3, %c0_4] : memref<11x256xbf16, #tpu.memory_space<vmem>>, vector<11x256xbf16>
    %cst = arith.constant dense<0.000000e+00> : vector<8x256xf32>
    %12 = tpu.matmul %10, %11, %cst {dimension_numbers = #tpu.dot_dimension_numbers<[1], [0], [0], [1], [0, 0, 1, 1], [], []>} : vector<8x11xbf16>, vector<11x256xbf16>, vector<8x256xf32> -> vector<8x256xf32>
    %13 = vector.broadcast %1 : vector<1x256xf32> to vector<8x256xf32>
    %14 = arith.addf %12, %13 : vector<8x256xf32>
    %cst_5 = arith.constant dense<0.000000e+00> : vector<8xf32>
    %15 = vector.multi_reduction <add>, %14, %cst_5 [1] : vector<8x256xf32> to vector<8xf32>
    %16 = vector.shape_cast %15 : vector<8xf32> to vector<8x1xf32>
    %cst_6 = arith.constant 3.906250e-03 : f32
    %17 = vector.broadcast %cst_6 : f32 to vector<8x1xf32>
    %18 = arith.mulf %16, %17 : vector<8x1xf32>
    %19 = vector.broadcast %18 : vector<8x1xf32> to vector<8x256xf32>
    %20 = arith.subf %14, %19 : vector<8x256xf32>
    %21 = arith.mulf %20, %20 : vector<8x256xf32>
    %cst_7 = arith.constant dense<0.000000e+00> : vector<8xf32>
    %22 = vector.multi_reduction <add>, %21, %cst_7 [1] : vector<8x256xf32> to vector<8xf32>
    %23 = vector.shape_cast %22 : vector<8xf32> to vector<8x1xf32>
    %cst_8 = arith.constant 3.906250e-03 : f32
    %24 = vector.broadcast %cst_8 : f32 to vector<8x1xf32>
    %25 = arith.mulf %23, %24 : vector<8x1xf32>
    %cst_9 = arith.constant 9.99999974E-6 : f32
    %26 = vector.broadcast %cst_9 : f32 to vector<8x1xf32>
    %27 = arith.addf %25, %26 : vector<8x1xf32>
    %28 = math.rsqrt %27 : vector<8x1xf32>
    %29 = arith.truncf %20 : vector<8x256xf32> to vector<8x256xbf16>
    %30 = arith.truncf %28 : vector<8x1xf32> to vector<8x1xbf16>
    %31 = vector.broadcast %30 : vector<8x1xbf16> to vector<8x256xbf16>
    %32 = arith.mulf %29, %31 : vector<8x256xbf16>
    %33 = arith.truncf %2 : vector<1x256xf32> to vector<1x256xbf16>
    %34 = vector.broadcast %33 : vector<1x256xbf16> to vector<8x256xbf16>
    %35 = arith.mulf %32, %34 : vector<8x256xbf16>
    %36 = arith.truncf %3 : vector<1x256xf32> to vector<1x256xbf16>
    %37 = vector.broadcast %36 : vector<1x256xbf16> to vector<8x256xbf16>
    %38 = arith.addf %35, %37 : vector<8x256xbf16>
    %cst_10 = arith.constant 0.000000e+00 : bf16
    %39 = vector.broadcast %cst_10 : bf16 to vector<8x256xbf16>
    %40 = arith.maximumf %38, %39 : vector<8x256xbf16>
    %c0_11 = arith.constant 0 : index
    %c0_12 = arith.constant 0 : index
    %41 = vector.load %arg3[%c0_11, %c0_12] : memref<256x256xbf16, #tpu.memory_space<vmem>>, vector<256x256xbf16>
    %cst_13 = arith.constant dense<0.000000e+00> : vector<8x256xf32>
    %42 = tpu.matmul %40, %41, %cst_13 {dimension_numbers = #tpu.dot_dimension_numbers<[1], [0], [0], [1], [0, 0, 1, 1], [], []>} : vector<8x256xbf16>, vector<256x256xbf16>, vector<8x256xf32> -> vector<8x256xf32>
    %43 = vector.broadcast %4 : vector<1x256xf32> to vector<8x256xf32>
    %44 = arith.addf %42, %43 : vector<8x256xf32>
    %cst_14 = arith.constant dense<0.000000e+00> : vector<8xf32>
    %45 = vector.multi_reduction <add>, %44, %cst_14 [1] : vector<8x256xf32> to vector<8xf32>
    %46 = vector.shape_cast %45 : vector<8xf32> to vector<8x1xf32>
    %cst_15 = arith.constant 3.906250e-03 : f32
    %47 = vector.broadcast %cst_15 : f32 to vector<8x1xf32>
    %48 = arith.mulf %46, %47 : vector<8x1xf32>
    %49 = vector.broadcast %48 : vector<8x1xf32> to vector<8x256xf32>
    %50 = arith.subf %44, %49 : vector<8x256xf32>
    %51 = arith.mulf %50, %50 : vector<8x256xf32>
    %cst_16 = arith.constant dense<0.000000e+00> : vector<8xf32>
    %52 = vector.multi_reduction <add>, %51, %cst_16 [1] : vector<8x256xf32> to vector<8xf32>
    %53 = vector.shape_cast %52 : vector<8xf32> to vector<8x1xf32>
    %cst_17 = arith.constant 3.906250e-03 : f32
    %54 = vector.broadcast %cst_17 : f32 to vector<8x1xf32>
    %55 = arith.mulf %53, %54 : vector<8x1xf32>
    %cst_18 = arith.constant 9.99999974E-6 : f32
    %56 = vector.broadcast %cst_18 : f32 to vector<8x1xf32>
    %57 = arith.addf %55, %56 : vector<8x1xf32>
    %58 = math.rsqrt %57 : vector<8x1xf32>
    %59 = arith.truncf %50 : vector<8x256xf32> to vector<8x256xbf16>
    %60 = arith.truncf %58 : vector<8x1xf32> to vector<8x1xbf16>
    %61 = vector.broadcast %60 : vector<8x1xbf16> to vector<8x256xbf16>
    %62 = arith.mulf %59, %61 : vector<8x256xbf16>
    %63 = arith.truncf %5 : vector<1x256xf32> to vector<1x256xbf16>
    %64 = vector.broadcast %63 : vector<1x256xbf16> to vector<8x256xbf16>
    %65 = arith.mulf %62, %64 : vector<8x256xbf16>
    %66 = arith.truncf %6 : vector<1x256xf32> to vector<1x256xbf16>
    %67 = vector.broadcast %66 : vector<1x256xbf16> to vector<8x256xbf16>
    %68 = arith.addf %65, %67 : vector<8x256xbf16>
    %cst_19 = arith.constant 0.000000e+00 : bf16
    %69 = vector.broadcast %cst_19 : bf16 to vector<8x256xbf16>
    %70 = arith.maximumf %68, %69 : vector<8x256xbf16>
    %71 = arith.extf %70 : vector<8x256xbf16> to vector<8x256xf32>
    %72 = vector.broadcast %7 : vector<1x256xf32> to vector<8x256xf32>
    %73 = arith.mulf %71, %72 : vector<8x256xf32>
    %cst_20 = arith.constant dense<0.000000e+00> : vector<8xf32>
    %74 = vector.multi_reduction <add>, %73, %cst_20 [1] : vector<8x256xf32> to vector<8xf32>
    %75 = vector.shape_cast %74 : vector<8xf32> to vector<8x1xf32>
    %76 = vector.broadcast %8 : vector<1x1xf32> to vector<8x1xf32>
    %77 = arith.addf %75, %76 : vector<8x1xf32>
    %c0_21 = arith.constant 0 : index
    %c0_22 = arith.constant 0 : index
    %78 = vector.load %arg5[%c0_21, %c0_22] : memref<8x1xf32, #tpu.memory_space<vmem>>, vector<8x1xf32>
    tpu.vector_store %arg5[%c0_21, %c0_22], %77 {strides = array<i32>} : memref<8x1xf32, #tpu.memory_space<vmem>>, vector<8x1xf32>,
    return
  }
  func.func @transform_0(%arg0: i32) -> (i32, i32) {
    %c0_i32 = arith.constant 0 : i32
    %c0_i32_0 = arith.constant 0 : i32
    return %arg0, %c0_i32 : i32, i32
  }
  func.func @transform_1(%arg0: i32) -> (i32, i32) {
    %c0_i32 = arith.constant 0 : i32
    %c0_i32_0 = arith.constant 0 : i32
    %c0_i32_1 = arith.constant 0 : i32
    return %c0_i32, %c0_i32_0 : i32, i32
  }
  func.func @transform_2(%arg0: i32) -> (i32, i32) {
    %c0_i32 = arith.constant 0 : i32
    %c0_i32_0 = arith.constant 0 : i32
    %c0_i32_1 = arith.constant 0 : i32
    return %c0_i32, %c0_i32_0 : i32, i32
  }
  func.func @transform_3(%arg0: i32) -> (i32, i32) {
    %c0_i32 = arith.constant 0 : i32
    %c0_i32_0 = arith.constant 0 : i32
    %c0_i32_1 = arith.constant 0 : i32
    return %c0_i32, %c0_i32_0 : i32, i32
  }
  func.func @transform_4(%arg0: i32) -> (i32, i32) {
    %c0_i32 = arith.constant 0 : i32
    %c0_i32_0 = arith.constant 0 : i32
    return %arg0, %c0_i32 : i32, i32
  }
}

</mosaic_0001>

<llo_original>
// kernel: tpu_custom_call.1
$region0: #{tpu_custom_call.1}
  #allocation0 [shape = 'u32[]', space=smem, size = 0x4, offset = 0x4, fixed_abs, tag = 'smem constant byte address 0x4 - core index']
  #allocation1 [shape = 'u32[144,128]{1,0:T(1,128)}', space=vmem, size = 0x12000, scoped, tag = 'internal scratch']
  %s0 = inlined_call_operand.hbm [shape: f32[16,11], index: 0, kind: input, shape index: {}]
  %s1 = inlined_call_operand.hbm [shape: bf16[11,256], index: 1, kind: input, shape index: {}]
  %s2 = inlined_call_operand.hbm [shape: bf16[256,256], index: 2, kind: input, shape index: {}]
  %s3 = inlined_call_operand.hbm [shape: f32[8,256], index: 3, kind: input, shape index: {}]
  %s4 = inlined_call_operand.vmem [shape: f32[16,1], index: 4, kind: output, shape index: {}]
  %s5 = sld [smem:[#allocation0]]
  $region65: #{tpu_custom_call.1} parent=0
    _
  %s7 = ssub.s32 1, %s5
  %s8 = scalar_select 0, %s7, %s5
  $region1: #{tpu_custom_call.1} parent=0
    #allocation2 [shape = 'u8[8192]{0}', space=vmem, size = 0x2000, scoped, tag = 'input window, operand 0']
    #allocation3 [shape = 's32[2]{0}', space=sflag, size = 0x8, scoped, tag = 'scoped memory for tpu_custom_call.1']
    #allocation4 [shape = 'u8[8192]{0}', space=vmem, size = 0x2000, scoped, tag = 'input window, operand 1, single buffered']
    #allocation5 [shape = 's32[1]{0}', space=sflag, size = 0x4, scoped, tag = 'scoped memory for tpu_custom_call.1']
    #allocation6 [shape = 'u8[131072]{0}', space=vmem, size = 0x20000, scoped, tag = 'input window, operand 2, single buffered']
    #allocation7 [shape = 'u8[8192]{0}', space=vmem, size = 0x2000, scoped, tag = 'input window, operand 3, single buffered']
    #allocation8 [shape = 's32[1]{0}', space=sflag, size = 0x4, scoped, tag = 'scoped memory for tpu_custom_call.1']
    %9 = vsyncpa [#allocation3], 0
    %s10 = scalar_lea.sflag [#allocation3], 1
    %11 = vsyncpa %s10, 0
    %12 = vsyncpa [#allocation5], 0
    %13 = vsyncpa [#allocation8], 0
    loop: start=0, step=1, limit=4
    $region2: #{tpu_custom_call.1} parent=1 // loop_pre_header
      _
    $region3: #{tpu_custom_call.1} parent=1 // loop_header
      %s15 = sphi 0, %s19
      %p16 = scmp.ge.s32.totalorder %s15, 4
      %s25 = sphi 0, %s27
      %s28 = sphi 0, %s25
      %s29 = sphi 0, %s28
      %s45 = sphi 0, %s29
      %s49 = sphi 0, %s49
      %s51 = sphi 0, %s49
      %s52 = sphi 0, %s51
      %s66 = sphi 0, %s52
      %s70 = sphi 0, %s70
      %s72 = sphi 0, %s70
      %s73 = sphi 0, %s72
      %s87 = sphi 0, %s73
      %s91 = sphi 0, %s91
      %s93 = sphi 0, %s91
      %s94 = sphi 0, %s93
      %s108 = sphi 0, %s94
      %s114 = sphi 0, %s116
      %s117 = sphi 0, %s114
      %s118 = sphi 0, %s117
      %s134 = sphi 0, %s118
    $region4: #{tpu_custom_call.1} parent=1 // loop_header_branch
      %18 = sbr.rel (%p16) target = $region8
    $region5: #{tpu_custom_call.1} parent=1 // loop_body
      %s20 = ssub.s32 %s15, 1
      %s21 = ssub.s32 %s15, 2
      %s22 = sadd.s32 %s15, 1
      %s23 = ssub.s32 %s15, %s22
      %p24 = scmp.eq.s32.totalorder %s23, 0
      %s26 = sadd.s32 %s25, 1
      %s27 = scalar_select %p24, %s25, %s26
      %p30 = pneg %p24
      %p31 = scmp.eq.s32.totalorder %s15, 1
      %p32 = por %p30, %p31
      %p33 = scmp.ne.s32.totalorder %s25, %s28
      %p34 = scmp.eq.s32.totalorder %s15, 0
      %p35 = por %p33, %p34
      %p36 = scmp.ne.s32.totalorder %s25, %s28
      %p37 = scmp.eq.s32.totalorder %s20, 1
      %p38 = por %p36, %p37
      %p39 = scmp.ne.s32.totalorder %s28, %s29
      %p40 = scmp.eq.s32.totalorder %s20, 0
      %p41 = por %p39, %p40
      %p42 = scmp.ne.s32.totalorder %s28, %s29
      %p43 = scmp.eq.s32.totalorder %s21, 1
      %p44 = por %p42, %p43
      %p46 = scmp.ne.s32.totalorder %s29, %s45
      %p47 = scmp.eq.s32.totalorder %s21, 0
      %p48 = por %p46, %p47
      %s50 = sadd.s32 %s49, 1
      %p53 = scmp.eq.s32.totalorder %s15, 1
      %p54 = scmp.ne.s32.totalorder %s49, %s51
      %p55 = scmp.eq.s32.totalorder %s15, 0
      %p56 = por %p54, %p55
      %p57 = scmp.ne.s32.totalorder %s49, %s51
      %p58 = scmp.eq.s32.totalorder %s20, 1
      %p59 = por %p57, %p58
      %p60 = scmp.ne.s32.totalorder %s51, %s52
      %p61 = scmp.eq.s32.totalorder %s20, 0
      %p62 = por %p60, %p61
      %p63 = scmp.ne.s32.totalorder %s51, %s52
      %p64 = scmp.eq.s32.totalorder %s21, 1
      %p65 = por %p63, %p64
      %p67 = scmp.ne.s32.totalorder %s52, %s66
      %p68 = scmp.eq.s32.totalorder %s21, 0
      %p69 = por %p67, %p68
      %s71 = sadd.s32 %s70, 1
      %p74 = scmp.eq.s32.totalorder %s15, 1
      %p75 = scmp.ne.s32.totalorder %s70, %s72
      %p76 = scmp.eq.s32.totalorder %s15, 0
      %p77 = por %p75, %p76
      %p78 = scmp.ne.s32.totalorder %s70, %s72
      %p79 = scmp.eq.s32.totalorder %s20, 1
      %p80 = por %p78, %p79
      %p81 = scmp.ne.s32.totalorder %s72, %s73
      %p82 = scmp.eq.s32.totalorder %s20, 0
      %p83 = por %p81, %p82
      %p84 = scmp.ne.s32.totalorder %s72, %s73
      %p85 = scmp.eq.s32.totalorder %s21, 1
      %p86 = por %p84, %p85
      %p88 = scmp.ne.s32.totalorder %s73, %s87
      %p89 = scmp.eq.s32.totalorder %s21, 0
      %p90 = por %p88, %p89
      %s92 = sadd.s32 %s91, 1
      %p95 = scmp.eq.s32.totalorder %s15, 1
      %p96 = scmp.ne.s32.totalorder %s91, %s93
      %p97 = scmp.eq.s32.totalorder %s15, 0
      %p98 = por %p96, %p97
      %p99 = scmp.ne.s32.totalorder %s91, %s93
      %p100 = scmp.eq.s32.totalorder %s20, 1
      %p101 = por %p99, %p100
      %p102 = scmp.ne.s32.totalorder %s93, %s94
      %p103 = scmp.eq.s32.totalorder %s20, 0
      %p104 = por %p102, %p103
      %p105 = scmp.ne.s32.totalorder %s93, %s94
      %p106 = scmp.eq.s32.totalorder %s21, 1
      %p107 = por %p105, %p106
      %p109 = scmp.ne.s32.totalorder %s94, %s108
      %p110 = scmp.eq.s32.totalorder %s21, 0
      %p111 = por %p109, %p110
      %s112 = ssub.s32 %s15, %s22
      %p113 = scmp.eq.s32.totalorder %s112, 0
      %s115 = sadd.s32 %s114, 1
      %s116 = scalar_select %p113, %s114, %s115
      %p119 = pneg %p113
      %p120 = scmp.eq.s32.totalorder %s15, 1
      %p121 = por %p119, %p120
      %p122 = scmp.ne.s32.totalorder %s114, %s117
      %p123 = scmp.eq.s32.totalorder %s15, 0
      %p124 = por %p122, %p123
      %p125 = scmp.ne.s32.totalorder %s114, %s117
      %p126 = scmp.eq.s32.totalorder %s20, 1
      %p127 = por %p125, %p126
      %p128 = scmp.ne.s32.totalorder %s117, %s118
      %p129 = scmp.eq.s32.totalorder %s20, 0
      %p130 = por %p128, %p129
      %p131 = scmp.ne.s32.totalorder %s117, %s118
      %p132 = scmp.eq.s32.totalorder %s21, 1
      %p133 = por %p131, %p132
      %p135 = scmp.ne.s32.totalorder %s118, %s134
      %p136 = scmp.eq.s32.totalorder %s21, 0
      %p137 = por %p135, %p136
      %p138 = scmp.le.s32.totalorder 1, %s15
      %p139 = scmp.lt.s32.totalorder %s15, 3
      %p140 = pnand %p138, %p139
      %p141 = pneg %p140
      // Predicated region
      $region9: #{tpu_custom_call.1} parent=5 // pred_check
        _
      $region10: #{tpu_custom_call.1} parent=5 // pred_check_branch
        %143 = sbr.rel (%p140) target = $region12
      $region11: #{tpu_custom_call.1} parent=5 // pred_region
        %s144 = ssub.s32 %s15, 1
        // Predicated region
        $region13: #{tpu_custom_call.1} parent=11 // pred_check
          %p145 = pneg %p62
        $region14: #{tpu_custom_call.1} parent=11 // pred_check_branch
          %147 = sbr.rel (%p145) target = $region16
        $region15: #{tpu_custom_call.1} parent=11 // pred_region
          %s149 = ssub.s32 256, 256
          %150 = vsyncadd [#allocation5], %s149
          %s151 = sshll.u32 [#allocation4], 4
          %s152 = int_to_ptr.vmem [resolvable:$true] %s151
          %157 = dma.hbm_to_vmem [thread:$0]  %s1, 256, %s152, [#allocation5], 128, 128, 8
        $region16: #{tpu_custom_call.1} parent=11 // pred_fallthru
          _
        // Predicated region
        $region17: #{tpu_custom_call.1} parent=11 // pred_check
          %p158 = pneg %p83
        $region18: #{tpu_custom_call.1} parent=11 // pred_check_branch
          %160 = sbr.rel (%p158) target = $region20
        $region19: #{tpu_custom_call.1} parent=11 // pred_region
          %s162 = ssub.s32 4096, 4096
          %163 = vsyncadd [#allocation5], %s162
          %s164 = sshll.u32 [#allocation6], 4
          %s165 = int_to_ptr.vmem [resolvable:$true] %s164
          %170 = dma.hbm_to_vmem [thread:$0]  %s2, 4096, %s165, [#allocation5], 128, 128, 8
        $region20: #{tpu_custom_call.1} parent=11 // pred_fallthru
          _
        // Predicated region
        $region21: #{tpu_custom_call.1} parent=11 // pred_check
          %p171 = pneg %p104
        $region22: #{tpu_custom_call.1} parent=11 // pred_check_branch
          %173 = sbr.rel (%p171) target = $region24
        $region23: #{tpu_custom_call.1} parent=11 // pred_region
          %s175 = ssub.s32 256, 256
          %176 = vsyncadd [#allocation8], %s175
          %s178 = sshll.u32 [#allocation7], 4
          %s179 = int_to_ptr.vmem [resolvable:$true] %s178
          %181 = dma.hbm_to_vmem [thread:$0]  %s3, 256, %s179, [#allocation8]
        $region24: #{tpu_custom_call.1} parent=11 // pred_fallthru
          _
      $region12: #{tpu_custom_call.1} parent=5 // pred_fallthru
        _
      %p182 = scmp.lt.s32.totalorder %s15, 2
      // Predicated region
      $region25: #{tpu_custom_call.1} parent=5 // pred_check
        %p183 = pneg %p182
      $region26: #{tpu_custom_call.1} parent=5 // pred_check_branch
        %185 = sbr.rel (%p183) target = $region28
      $region27: #{tpu_custom_call.1} parent=5 // pred_region
        // Predicated region
        $region29: #{tpu_custom_call.1} parent=27 // pred_check
          %p186 = pneg %p35
        $region30: #{tpu_custom_call.1} parent=27 // pred_check_branch
          %188 = sbr.rel (%p186) target = $region32
        $region31: #{tpu_custom_call.1} parent=27 // pred_region
          %s189 = sand.u32 %s25, 1
          %s190 = scalar_lea.sflag [#allocation3], %s189
          %s191 = sand.u32 %s25, 1
          %s192 = smul.addr %s191, 8
          %s193 = scalar_lea.vmem [#allocation2], %s192
          %s195 = ssub.s32 128, 128
          %196 = vsyncadd %s190, %s195
          %s197 = smul.addr %s15, 128
          %s198 = scalar_lea.hbm %s0, %s197
          %s200 = sshll.u32 %s193, 4
          %s201 = int_to_ptr.vmem [resolvable:$true] %s200
          %203 = dma.hbm_to_vmem [thread:$0]  %s198, 128, %s201, %s190
        $region32: #{tpu_custom_call.1} parent=27 // pred_fallthru
          _
      $region28: #{tpu_custom_call.1} parent=5 // pred_fallthru
        _
      %p204 = scmp.le.s32.totalorder 1, %s15
      %p205 = scmp.lt.s32.totalorder %s15, 3
      %p206 = pnand %p204, %p205
      %p207 = pneg %p206
      // Predicated region
      $region33: #{tpu_custom_call.1} parent=5 // pred_check
        _
      $region34: #{tpu_custom_call.1} parent=5 // pred_check_branch
        %209 = sbr.rel (%p206) target = $region36
      $region35: #{tpu_custom_call.1} parent=5 // pred_region
        %s210 = ssub.s32 %s15, 1
        %s211 = sand.u32 %s28, 1
        %s212 = scalar_lea.sflag [#allocation3], %s211
        %s213 = sand.u32 %s28, 1
        %s214 = smul.addr %s213, 8
        %s215 = scalar_lea.vmem [#allocation2], %s214
        // Predicated region
        $region37: #{tpu_custom_call.1} parent=35 // pred_check
          %p216 = pneg %p41
        $region38: #{tpu_custom_call.1} parent=35 // pred_check_branch
          %218 = sbr.rel (%p216) target = $region40
        $region39: #{tpu_custom_call.1} parent=35 // pred_region
          %219 = dma.done %s212, 128
        $region40: #{tpu_custom_call.1} parent=35 // pred_fallthru
          _
        // Predicated region
        $region41: #{tpu_custom_call.1} parent=35 // pred_check
          %p220 = pneg %p62
        $region42: #{tpu_custom_call.1} parent=35 // pred_check_branch
          %222 = sbr.rel (%p220) target = $region44
        $region43: #{tpu_custom_call.1} parent=35 // pred_region
          %223 = dma.done [#allocation5], 256
        $region44: #{tpu_custom_call.1} parent=35 // pred_fallthru
          _
        // Predicated region
        $region45: #{tpu_custom_call.1} parent=35 // pred_check
          %p224 = pneg %p83
        $region46: #{tpu_custom_call.1} parent=35 // pred_check_branch
          %226 = sbr.rel (%p224) target = $region48
        $region47: #{tpu_custom_call.1} parent=35 // pred_region
          %227 = dma.done [#allocation5], 4096
        $region48: #{tpu_custom_call.1} parent=35 // pred_fallthru
          _
        // Predicated region
        $region49: #{tpu_custom_call.1} parent=35 // pred_check
          %p228 = pneg %p104
        $region50: #{tpu_custom_call.1} parent=35 // pred_check_branch
          %230 = sbr.rel (%p228) target = $region52
        $region51: #{tpu_custom_call.1} parent=35 // pred_region
          %231 = dma.done [#allocation8], 256
        $region52: #{tpu_custom_call.1} parent=35 // pred_fallthru
          _
        %s232 = sand.u32 %s28, 1
        %s233 = scalar_lea.sflag [#allocation3], %s232
        %s234 = sand.u32 %s28, 1
        %s235 = smul.addr %s234, 8
        %s236 = scalar_lea.vmem [#allocation2], %s235
        %p237 = pneg %p41
        %p238 = pneg %p38
        %p239 = pneg %p62
        %p240 = pneg %p59
        %p241 = pneg %p83
        %p242 = pneg %p80
        %p243 = pneg %p104
        %p244 = pneg %p101
        %p245 = pneg %p130
        %p246 = pneg %p127
        %p247 = scmp.lt.s32.totalorder %s20, 1
        %s248 = scalar_select %p247, %s20, 1
        %s249 = smul.addr %s248, 8
        %s250 = scalar_lea.vmem %s4, %s249
        %p251 = scmp.lt.s32.totalorder %s20, 1
        %s252 = scalar_select %p251, %s20, 1
        %s253 = smul.addr %s252, 8
        %s254 = scalar_lea.vmem %s4, %s253
        %v256 = vld [vmem:[#allocation7] sm:$0xff]
        %v257 = vld [vmem:[#allocation7 + $0x8] sm:$0xff]
        %v258 = vld [vmem:[%s215] sm:$0xff]
        %v259 = vpack.c.bf16 %v258, %v258
        %v260 = vld [vmem:[#allocation4] sm:$0xff]
        %v261 = vld [vmem:[#allocation4 + $0x8] sm:$0x33]
        %v262 = vlaneseq
        %v263 = vshrl.u32 %v262, 7
        %v264 = vsub.s32 0, %v263
        %v265 = vrot.slane %v256, %v264
        %v266 = vlaneseq
        %v267 = vshrl.u32 %v266, 7
        %v268 = vsub.s32 0, %v267
        %v269 = vrot.slane %v257, %v268
        %v272 = vunpack.c.l.b16 %v260
        %v273 = vunpack.c.h.b16 %v260
        %v274 = vunpack.c.l.b16 %v261
        %v275 = vunpack.c.h.b16 %v261
        %v276 = vpack.c.b16 %v274, %v272
        %v277 = vpack.c.b16 %v275, %v273
        %vm278 = vcmask 89088
        %v280 = vsel %vm278, %v259, 0
        %vm282 = vcmask 1044480
        %vm283 = vcmask 1045504
        %v284 = vsel %vm282, 4294967295, 65535
        %v285 = vsel %vm283, %v284, 0
        %v287 = vand.u32 %v276, %v285
        %v290 = vand.u32 %v277, %v285
        %292 = vmatprep.subr.bf16.mxu0 %v290
        %293 = vmatpush1.bf16.msra.mxu0 %v287
        %294 = vmatprep.subr.bf16.mxu0 0
        %295 = vmatpush1.bf16.msra.mxu0 0
        %296 = vmatprep.subr.bf16.mxu0 0
        %297 = vmatpush1.bf16.msra.mxu0 0
        %298 = vmatprep.subr.bf16.mxu0 0
        %299 = vmatpush1.bf16.msra.mxu0 0
        %300 = vmatprep.subr.bf16.mxu0 0
        %301 = vmatpush1.bf16.msra.mxu0 0
        %302 = vmatprep.subr.bf16.mxu0 0
        %303 = vmatpush1.bf16.msra.mxu0 0
        %304 = vmatprep.subr.bf16.mxu0 0
        %305 = vmatpush1.bf16.msra.mxu0 0
        %306 = vmatprep.subr.bf16.mxu0 0
        %307 = vmatpush1.bf16.msra.mxu0 0
        %308 = vmatprep.subr.bf16.mxu0 0
        %309 = vmatpush1.bf16.msra.mxu0 0
        %310 = vmatprep.subr.bf16.mxu0 0
        %311 = vmatpush1.bf16.msra.mxu0 0
        %312 = vmatprep.subr.bf16.mxu0 0
        %313 = vmatpush1.bf16.msra.mxu0 0
        %314 = vmatprep.subr.bf16.mxu0 0
        %315 = vmatpush1.bf16.msra.mxu0 0
        %316 = vmatprep.subr.bf16.mxu0 0
        %317 = vmatpush1.bf16.msra.mxu0 0
        %318 = vmatprep.subr.bf16.mxu0 0
        %319 = vmatpush1.bf16.msra.mxu0 0
        %320 = vmatprep.subr.bf16.mxu0 0
        %321 = vmatpush1.bf16.msra.mxu0 0
        %322 = vmatprep.subr.bf16.mxu0 0
        %323 = vmatpush1.bf16.msra.mxu0 0
        %324 = vmatprep.mubr.bf16.mxu0 0
        %325 = vmatmul.mubr.bf16.gmra.mrb[0].mxu0 %v280
        %v326 = vpop.f32.mrb[0].mxu0
        %v327 = vadd.f32 %v265, %v326
        %v328 = vpop.f32.mrb[0].mxu0
        %v329 = vadd.f32 %v269, %v328
        %v330 = vpop.f32.mrb[0].mxu0
        %v331 = vpop.f32.mrb[0].mxu0
        %332 = vdwg.mxu0
        %v333 = vadd.f32 %v327, %v329
        %334 = vadd.xlane.f32.xlu0 %v333
        %v335 = vpop.xlane.xlu0 %334
        %v336 = vmul.f32 %v335, 0.00390625
        %v337 = vsub.f32 %v327, %v336
        %v338 = vsub.f32 %v329, %v336
        %v339 = vmul.f32 %v337, %v337
        %v340 = vmul.f32 %v338, %v338
        %v341 = vadd.f32 %v339, %v340
        %342 = vadd.xlane.f32.xlu0 %v341
        %v343 = vpop.xlane.xlu0 %342
        %v344 = vmul.f32 %v343, 0.00390625
        %v345 = vadd.f32 %v344, 1e-05
        %v346 = vrsqrt.pop %v345
        %v347 = vpack.c.bf16 %v337, %v337
        %v348 = vpack.c.bf16 %v338, %v338
        %v349 = vpack.c.bf16 %v346, %v346
        %v350 = vmul.bf16 %v347, %v349
        %v351 = vmul.bf16 %v348, %v349
        %v352 = vpack.c.bf16 %v256, %v256
        %v353 = vpack.c.bf16 %v257, %v257
        %v355 = vshrl.u32 %v352, 16
        %v356 = vpack.i.b16 %v355, %v355
        %v358 = vlaneseq
        %v359 = vshrl.u32 %v358, 7
        %v360 = vsub.s32 0, %v359
        %v361 = vrot.slane %v356, %v360
        %v363 = vshrl.u32 %v353, 16
        %v364 = vpack.i.b16 %v363, %v363
        %v366 = vlaneseq
        %v367 = vshrl.u32 %v366, 7
        %v368 = vsub.s32 0, %v367
        %v369 = vrot.slane %v364, %v368
        %v370 = vmul.bf16 %v350, %v361
        %v371 = vmul.bf16 %v351, %v369
        %v372 = vpack.i.b16 %v352, %v352
        %v374 = vlaneseq
        %v375 = vshrl.u32 %v374, 7
        %v376 = vsub.s32 1, %v375
        %v377 = vrot.slane %v372, %v376
        %v378 = vpack.i.b16 %v353, %v353
        %v380 = vlaneseq
        %v381 = vshrl.u32 %v380, 7
        %v382 = vsub.s32 1, %v381
        %v383 = vrot.slane %v378, %v382
        %v384 = vadd.bf16 %v370, %v377
        %v385 = vadd.bf16 %v371, %v383
        %v386 = vmax.bf16 %v384, 0
        %v387 = vmax.bf16 %v385, 0
        %v388 = vld [vmem:[#allocation6] sm:$0xff]
        %v389 = vld [vmem:[#allocation6 + $0x8] sm:$0xff]
        %v390 = vld [vmem:[#allocation6 + $0x10] sm:$0xff]
        %v391 = vld [vmem:[#allocation6 + $0x18] sm:$0xff]
        %v392 = vld [vmem:[#allocation6 + $0x20] sm:$0xff]
        %v393 = vld [vmem:[#allocation6 + $0x28] sm:$0xff]
        %v394 = vld [vmem:[#allocation6 + $0x30] sm:$0xff]
        %v395 = vld [vmem:[#allocation6 + $0x38] sm:$0xff]
        %v396 = vld [vmem:[#allocation6 + $0x40] sm:$0xff]
        %v397 = vld [vmem:[#allocation6 + $0x48] sm:$0xff]
        %v398 = vld [vmem:[#allocation6 + $0x50] sm:$0xff]
        %v399 = vld [vmem:[#allocation6 + $0x58] sm:$0xff]
        %v400 = vld [vmem:[#allocation6 + $0x60] sm:$0xff]
        %v401 = vld [vmem:[#allocation6 + $0x68] sm:$0xff]
        %v402 = vld [vmem:[#allocation6 + $0x70] sm:$0xff]
        %v403 = vld [vmem:[#allocation6 + $0x78] sm:$0xff]
        %v404 = vld [vmem:[#allocation6 + $0x80] sm:$0xff]
        %v405 = vld [vmem:[#allocation6 + $0x88] sm:$0xff]
        %v406 = vld [vmem:[#allocation6 + $0x90] sm:$0xff]
        %v407 = vld [vmem:[#allocation6 + $0x98] sm:$0xff]
        %v408 = vld [vmem:[#allocation6 + $0xa0] sm:$0xff]
        %v409 = vld [vmem:[#allocation6 + $0xa8] sm:$0xff]
        %v410 = vld [vmem:[#allocation6 + $0xb0] sm:$0xff]
        %v411 = vld [vmem:[#allocation6 + $0xb8] sm:$0xff]
        %v412 = vld [vmem:[#allocation6 + $0xc0] sm:$0xff]
        %v413 = vld [vmem:[#allocation6 + $0xc8] sm:$0xff]
        %v414 = vld [vmem:[#allocation6 + $0xd0] sm:$0xff]
        %v415 = vld [vmem:[#allocation6 + $0xd8] sm:$0xff]
        %v416 = vld [vmem:[#allocation6 + $0xe0] sm:$0xff]
        %v417 = vld [vmem:[#allocation6 + $0xe8] sm:$0xff]
        %v418 = vld [vmem:[#allocation6 + $0xf0] sm:$0xff]
        %v419 = vld [vmem:[#allocation6 + $0xf8] sm:$0xff]
        %v420 = vlaneseq
        %v421 = vshrl.u32 %v420, 7
        %v422 = vsub.s32 3, %v421
        %v423 = vrot.slane %v256, %v422
        %v424 = vlaneseq
        %v425 = vshrl.u32 %v424, 7
        %v426 = vsub.s32 3, %v425
        %v427 = vrot.slane %v257, %v426
        %v460 = vunpack.c.l.b16 %v388
        %v461 = vunpack.c.h.b16 %v388
        %v462 = vunpack.c.l.b16 %v389
        %v463 = vunpack.c.h.b16 %v389
        %v464 = vunpack.c.l.b16 %v390
        %v465 = vunpack.c.h.b16 %v390
        %v466 = vunpack.c.l.b16 %v391
        %v467 = vunpack.c.h.b16 %v391
        %v468 = vunpack.c.l.b16 %v392
        %v469 = vunpack.c.h.b16 %v392
        %v470 = vunpack.c.l.b16 %v393
        %v471 = vunpack.c.h.b16 %v393
        %v472 = vunpack.c.l.b16 %v394
        %v473 = vunpack.c.h.b16 %v394
        %v474 = vunpack.c.l.b16 %v395
        %v475 = vunpack.c.h.b16 %v395
        %v476 = vunpack.c.l.b16 %v396
        %v477 = vunpack.c.h.b16 %v396
        %v478 = vunpack.c.l.b16 %v397
        %v479 = vunpack.c.h.b16 %v397
        %v480 = vunpack.c.l.b16 %v398
        %v481 = vunpack.c.h.b16 %v398
        %v482 = vunpack.c.l.b16 %v399
        %v483 = vunpack.c.h.b16 %v399
        %v484 = vunpack.c.l.b16 %v400
        %v485 = vunpack.c.h.b16 %v400
        %v486 = vunpack.c.l.b16 %v401
        %v487 = vunpack.c.h.b16 %v401
        %v488 = vunpack.c.l.b16 %v402
        %v489 = vunpack.c.h.b16 %v402
        %v490 = vunpack.c.l.b16 %v403
        %v491 = vunpack.c.h.b16 %v403
        %v492 = vunpack.c.l.b16 %v404
        %v493 = vunpack.c.h.b16 %v404
        %v494 = vunpack.c.l.b16 %v405
        %v495 = vunpack.c.h.b16 %v405
        %v496 = vunpack.c.l.b16 %v406
        %v497 = vunpack.c.h.b16 %v406
        %v498 = vunpack.c.l.b16 %v407
        %v499 = vunpack.c.h.b16 %v407
        %v500 = vunpack.c.l.b16 %v408
        %v501 = vunpack.c.h.b16 %v408
        %v502 = vunpack.c.l.b16 %v409
        %v503 = vunpack.c.h.b16 %v409
        %v504 = vunpack.c.l.b16 %v410
        %v505 = vunpack.c.h.b16 %v410
        %v506 = vunpack.c.l.b16 %v411
        %v507 = vunpack.c.h.b16 %v411
        %v508 = vunpack.c.l.b16 %v412
        %v509 = vunpack.c.h.b16 %v412
        %v510 = vunpack.c.l.b16 %v413
        %v511 = vunpack.c.h.b16 %v413
        %v512 = vunpack.c.l.b16 %v414
        %v513 = vunpack.c.h.b16 %v414
        %v514 = vunpack.c.l.b16 %v415
        %v515 = vunpack.c.h.b16 %v415
        %v516 = vunpack.c.l.b16 %v416
        %v517 = vunpack.c.h.b16 %v416
        %v518 = vunpack.c.l.b16 %v417
        %v519 = vunpack.c.h.b16 %v417
        %v520 = vunpack.c.l.b16 %v418
        %v521 = vunpack.c.h.b16 %v418
        %v522 = vunpack.c.l.b16 %v419
        %v523 = vunpack.c.h.b16 %v419
        %v524 = vpack.c.b16 %v462, %v460
        %v525 = vpack.c.b16 %v463, %v461
        %v526 = vpack.c.b16 %v466, %v464
        %v527 = vpack.c.b16 %v467, %v465
        %v528 = vpack.c.b16 %v470, %v468
        %v529 = vpack.c.b16 %v471, %v469
        %v530 = vpack.c.b16 %v474, %v472
        %v531 = vpack.c.b16 %v475, %v473
        %v532 = vpack.c.b16 %v478, %v476
        %v533 = vpack.c.b16 %v479, %v477
        %v534 = vpack.c.b16 %v482, %v480
        %v535 = vpack.c.b16 %v483, %v481
        %v536 = vpack.c.b16 %v486, %v484
        %v537 = vpack.c.b16 %v487, %v485
        %v538 = vpack.c.b16 %v490, %v488
        %v539 = vpack.c.b16 %v491, %v489
        %v540 = vpack.c.b16 %v494, %v492
        %v541 = vpack.c.b16 %v495, %v493
        %v542 = vpack.c.b16 %v498, %v496
        %v543 = vpack.c.b16 %v499, %v497
        %v544 = vpack.c.b16 %v502, %v500
        %v545 = vpack.c.b16 %v503, %v501
        %v546 = vpack.c.b16 %v506, %v504
        %v547 = vpack.c.b16 %v507, %v505
        %v548 = vpack.c.b16 %v510, %v508
        %v549 = vpack.c.b16 %v511, %v509
        %v550 = vpack.c.b16 %v514, %v512
        %v551 = vpack.c.b16 %v515, %v513
        %v552 = vpack.c.b16 %v518, %v516
        %v553 = vpack.c.b16 %v519, %v517
        %v554 = vpack.c.b16 %v522, %v520
        %v555 = vpack.c.b16 %v523, %v521
        %588 = vmatprep.subr.bf16.mxu0 %v525
        %589 = vmatpush1.bf16.msra.mxu0 %v524
        %590 = vmatprep.subr.bf16.mxu0 %v527
        %591 = vmatpush1.bf16.msra.mxu0 %v526
        %592 = vmatprep.subr.bf16.mxu0 %v529
        %593 = vmatpush1.bf16.msra.mxu0 %v528
        %594 = vmatprep.subr.bf16.mxu0 %v531
        %595 = vmatpush1.bf16.msra.mxu0 %v530
        %596 = vmatprep.subr.bf16.mxu0 %v533
        %597 = vmatpush1.bf16.msra.mxu0 %v532
        %598 = vmatprep.subr.bf16.mxu0 %v535
        %599 = vmatpush1.bf16.msra.mxu0 %v534
        %600 = vmatprep.subr.bf16.mxu0 %v537
        %601 = vmatpush1.bf16.msra.mxu0 %v536
        %602 = vmatprep.subr.bf16.mxu0 %v539
        %603 = vmatpush1.bf16.msra.mxu0 %v538
        %604 = vmatprep.subr.bf16.mxu0 %v541
        %605 = vmatpush1.bf16.msra.mxu0 %v540
        %606 = vmatprep.subr.bf16.mxu0 %v543
        %607 = vmatpush1.bf16.msra.mxu0 %v542
        %608 = vmatprep.subr.bf16.mxu0 %v545
        %609 = vmatpush1.bf16.msra.mxu0 %v544
        %610 = vmatprep.subr.bf16.mxu0 %v547
        %611 = vmatpush1.bf16.msra.mxu0 %v546
        %612 = vmatprep.subr.bf16.mxu0 %v549
        %613 = vmatpush1.bf16.msra.mxu0 %v548
        %614 = vmatprep.subr.bf16.mxu0 %v551
        %615 = vmatpush1.bf16.msra.mxu0 %v550
        %616 = vmatprep.subr.bf16.mxu0 %v553
        %617 = vmatpush1.bf16.msra.mxu0 %v552
        %618 = vmatprep.subr.bf16.mxu0 %v555
        %619 = vmatpush1.bf16.msra.mxu0 %v554
        %620 = vmatprep.mubr.bf16.mxu0 %v387
        %621 = vmatmul.mubr.bf16.gmra.mrb[0].mxu0 %v386
        %v622 = vpop.f32.mrb[0].mxu0
        %v623 = vadd.f32 %v423, %v622
        %v624 = vpop.f32.mrb[0].mxu0
        %v625 = vadd.f32 %v427, %v624
        %v626 = vpop.f32.mrb[0].mxu0
        %v627 = vpop.f32.mrb[0].mxu0
        %628 = vdwg.mxu0
        %v629 = vadd.f32 %v623, %v625
        %630 = vadd.xlane.f32.xlu0 %v629
        %v631 = vpop.xlane.xlu0 %630
        %v632 = vmul.f32 %v631, 0.00390625
        %v633 = vsub.f32 %v623, %v632
        %v634 = vsub.f32 %v625, %v632
        %v635 = vmul.f32 %v633, %v633
        %v636 = vmul.f32 %v634, %v634
        %v637 = vadd.f32 %v635, %v636
        %638 = vadd.xlane.f32.xlu0 %v637
        %v639 = vpop.xlane.xlu0 %638
        %v640 = vmul.f32 %v639, 0.00390625
        %v641 = vadd.f32 %v640, 1e-05
        %v642 = vrsqrt.pop %v641
        %v643 = vpack.c.bf16 %v633, %v633
        %v644 = vpack.c.bf16 %v634, %v634
        %v645 = vpack.c.bf16 %v642, %v642
        %v646 = vmul.bf16 %v643, %v645
        %v647 = vmul.bf16 %v644, %v645
        %v648 = vlaneseq
        %v649 = vshrl.u32 %v648, 7
        %v650 = vsub.s32 2, %v649
        %v651 = vrot.slane %v372, %v650
        %v652 = vlaneseq
        %v653 = vshrl.u32 %v652, 7
        %v654 = vsub.s32 2, %v653
        %v655 = vrot.slane %v378, %v654
        %v656 = vmul.bf16 %v646, %v651
        %v657 = vmul.bf16 %v647, %v655
        %v658 = vlaneseq
        %v659 = vshrl.u32 %v658, 7
        %v660 = vsub.s32 2, %v659
        %v661 = vrot.slane %v356, %v660
        %v662 = vlaneseq
        %v663 = vshrl.u32 %v662, 7
        %v664 = vsub.s32 2, %v663
        %v665 = vrot.slane %v364, %v664
        %v666 = vadd.bf16 %v656, %v661
        %v667 = vadd.bf16 %v657, %v665
        %v668 = vmax.bf16 %v666, 0
        %v669 = vmax.bf16 %v667, 0
        %v670 = vunpack.c.l.bf16 %v668
        %v671 = vunpack.c.l.bf16 %v669
        %v672 = vlaneseq
        %v673 = vshrl.u32 %v672, 7
        %v674 = vsub.s32 6, %v673
        %v675 = vrot.slane %v256, %v674
        %v676 = vlaneseq
        %v677 = vshrl.u32 %v676, 7
        %v678 = vsub.s32 6, %v677
        %v679 = vrot.slane %v257, %v678
        %v680 = vmul.f32 %v670, %v675
        %v681 = vmul.f32 %v671, %v679
        %v682 = vadd.f32 %v680, %v681
        %683 = vadd.xlane.f32.xlu0 %v682
        %v684 = vpop.xlane.xlu0 %683
        %v685 = vlaneseq
        %v686 = vshrl.u32 %v685, 7
        %v687 = vsub.s32 7, %v686
        %v688 = vrot.slane %v256, %v687
        %v689 = vadd.f32 %v684, %v688
        %vm690 = vcmask 7168
        %691 = vst.msk [vmem:[%s254] sm:$0xff] %vm690, %v689
        %p692 = scmp.lt.s32.totalorder %s20, 1
        %s693 = scalar_select %p692, %s20, 1
        %s694 = smul.addr %s693, 8
        %s695 = scalar_lea.vmem %s4, %s694
        // Predicated region
        $region53: #{tpu_custom_call.1} parent=35 // pred_check
          %p696 = pneg %p127
        $region54: #{tpu_custom_call.1} parent=35 // pred_check_branch
          %698 = sbr.rel (%p696) target = $region56
        $region55: #{tpu_custom_call.1} parent=35 // pred_region
          _
        $region56: #{tpu_custom_call.1} parent=35 // pred_fallthru
          _
      $region36: #{tpu_custom_call.1} parent=5 // pred_fallthru
        _
      %p699 = scmp.le.s32.totalorder 2, %s15
      // Predicated region
      $region57: #{tpu_custom_call.1} parent=5 // pred_check
        %p700 = pneg %p699
      $region58: #{tpu_custom_call.1} parent=5 // pred_check_branch
        %702 = sbr.rel (%p700) target = $region60
      $region59: #{tpu_custom_call.1} parent=5 // pred_region
        %s703 = ssub.s32 %s15, 2
        // Predicated region
        $region61: #{tpu_custom_call.1} parent=59 // pred_check
          %p704 = pneg %p133
        $region62: #{tpu_custom_call.1} parent=59 // pred_check_branch
          %706 = sbr.rel (%p704) target = $region64
        $region63: #{tpu_custom_call.1} parent=59 // pred_region
          %p707 = scmp.lt.s32.totalorder %s21, 1
          %s708 = scalar_select %p707, %s21, 1
          %s709 = smul.addr %s708, 8
          %s710 = scalar_lea.vmem %s4, %s709
        $region64: #{tpu_custom_call.1} parent=59 // pred_fallthru
          _
      $region60: #{tpu_custom_call.1} parent=5 // pred_fallthru
        _
    $region6: #{tpu_custom_call.1} parent=1 // loop_footer
      %s19 = sadd.s32 1, %s15
    $region7: #{tpu_custom_call.1} parent=1 // loop_footer_branch
      %14 = sbr.rel target = $region3
    $region8: #{tpu_custom_call.1} parent=1 // loop_exit
      _
    %711 = vsyncpa [#allocation3], 1
    %s712 = scalar_lea.sflag [#allocation3], 1
    %713 = vsyncpa %s712, 1
    %714 = vsyncpa [#allocation5], 1
    %715 = vsyncpa [#allocation8], 1

</llo_original>
